<compile_context>
chip_gen: v5e
topology: v5e:2x2
jax: 0.10.0
libtpu: 0.0.40
codegen_flags: <defaults>
</compile_context>

<pallas_src>
import functools
import math

import jax
import jax.numpy as jnp
from jax import lax
from jax.experimental import pallas as pl
from jax.experimental.pallas import tpu as pltpu

_LANE = 128      # vreg lane width
_SUBLANE = 8     # f32 sublane count


def _round_up(v, m):
    return ((v + m - 1) // m) * m


def _pad2d(x, rows, cols):
    r, c = x.shape
    if r == rows and c == cols:
        return x
    return jnp.zeros((rows, cols), x.dtype).at[:r, :c].set(x)


# --------------------------------------------------------------------------
# Single-step kernel:  o = x @ K   (one MXU pass, everything resident in VMEM)
# --------------------------------------------------------------------------
def _koopman_step_kernel(x_ref, k_ref, o_ref):
    o_ref[...] = jnp.dot(
        x_ref[...], k_ref[...], preferred_element_type=jnp.float32
    ).astype(o_ref.dtype)


def koopman_forward(x_n, k_matrix):
    """Applies the Koopman operator: returns x_n @ k_matrix.

    x_n: [bs, obsdim] (or [obsdim], treated as bs=1 and squeezed back)
    k_matrix: [obsdim, obsdim]
    """
    squeeze_batch = x_n.ndim == 1
    if squeeze_batch:
        x_n = x_n[None, :]

    bs, n = x_n.shape
    assert k_matrix.shape == (n, n)

    bs_p = _round_up(max(bs, _SUBLANE), _SUBLANE)
    n_p = _round_up(n, _LANE)

    x_p = _pad2d(x_n, bs_p, n_p)
    k_p = _pad2d(k_matrix, n_p, n_p)

    out_p = pl.pallas_call(
        _koopman_step_kernel,
        out_shape=jax.ShapeDtypeStruct((bs_p, n_p), x_n.dtype),
        in_specs=[
            pl.BlockSpec(memory_space=pltpu.MemorySpace.VMEM),
            pl.BlockSpec(memory_space=pltpu.MemorySpace.VMEM),
        ],
        out_specs=pl.BlockSpec(memory_space=pltpu.MemorySpace.VMEM),
    )(x_p, k_p)

    out = out_p[:bs, :n]
    if squeeze_batch:
        out = out[0]
    return out


# --------------------------------------------------------------------------
# Fused multi-step rollout kernel:  x_{t+1} = x_t @ K  for t = 0..T-1
# K is DMA'd into VMEM once and stays resident; the output is one lane-dense
# [T, bs_p, n_p] slab written incrementally. The serial step loop is fully
# unrolled so the LLO scheduler can overlap MXU push/pop across steps.
# --------------------------------------------------------------------------
def _koopman_rollout_kernel(x_ref, k_ref, o_ref, *, num_steps):
    k = k_ref[...]

    def body(t, x):
        x_next = jnp.dot(
            x, k, preferred_element_type=jnp.float32
        ).astype(o_ref.dtype)
        o_ref[t] = x_next
        return x_next

    lax.fori_loop(0, num_steps, body, x_ref[...], unroll=True)


def koopman_rollout(x0, k_matrix, num_steps):
    """Returns stacked [num_steps, bs, obsdim] trajectory x_t = x0 @ K^t (t>=1)."""
    bs, n = x0.shape
    assert k_matrix.shape == (n, n)

    bs_p = _round_up(max(bs, _SUBLANE), _SUBLANE)
    n_p = _round_up(n, _LANE)

    x_p = _pad2d(x0, bs_p, n_p)
    k_p = _pad2d(k_matrix, n_p, n_p)

    out_p = pl.pallas_call(
        functools.partial(_koopman_rollout_kernel, num_steps=num_steps),
        out_shape=jax.ShapeDtypeStruct((num_steps, bs_p, n_p), x0.dtype),
        in_specs=[
            pl.BlockSpec(memory_space=pltpu.MemorySpace.VMEM),
            pl.BlockSpec(memory_space=pltpu.MemorySpace.VMEM),
        ],
        out_specs=pl.BlockSpec(memory_space=pltpu.MemorySpace.VMEM),
    )(x_p, k_p)

    return out_p[:, :bs, :n]


def init_koopman_matrix(key, latent_size, dtype=jnp.float32):
    """Deterministic Xavier-uniform init matching torch.nn.init.xavier_uniform_."""
    bound = math.sqrt(6.0 / (latent_size + latent_size))
    return jax.random.uniform(
        key, (latent_size, latent_size), dtype=dtype, minval=-bound, maxval=bound
    )


if __name__ == "__main__":
    # Small config consistent with the module: args['num_obs'] = 32, batch = 8.
    num_obs = 32
    batch = 8
    num_steps = 4

    key = jax.random.PRNGKey(0)
    k_key, x_key = jax.random.split(key)

    k_matrix = init_koopman_matrix(k_key, num_obs)
    x_n = jax.random.normal(x_key, (batch, num_obs), dtype=jnp.float32)

    # --- single-step forward (matches the PyTorch module's forward) ---
    x_nn = koopman_forward(x_n, k_matrix)
    x_nn = jax.block_until_ready(x_nn)

    ref = x_n @ k_matrix
    assert x_nn.shape == (batch, num_obs)
    assert jnp.allclose(x_nn, ref, atol=1e-5, rtol=1e-5)

    # --- fused multi-step rollout (one pallas_call, K resident in VMEM) ---
    traj = koopman_rollout(x_n, k_matrix, num_steps)
    traj = jax.block_until_ready(traj)

    ref_steps = []
    xr = x_n
    for _ in range(num_steps):
        xr = xr @ k_matrix
        ref_steps.append(xr)
    ref_traj = jnp.stack(ref_steps)

    assert traj.shape == (num_steps, batch, num_obs)
    assert jnp.allclose(traj, ref_traj, atol=1e-4, rtol=1e-4)

    print("KERNEL_OK")
</pallas_src>

<mosaic_0001>
module attributes {stable_mosaic.version = 11 : i64} {
  func.func @_koopman_step_kernel(%arg0: memref<8x128xf32, #tpu.memory_space<vmem>>, %arg1: memref<128x128xf32, #tpu.memory_space<vmem>>, %arg2: memref<8x128xf32, #tpu.memory_space<vmem>>) attributes {dimension_semantics = [], scalar_prefetch = 0 : i64, scratch_operands = 0 : i64, tpu.core_type = #tpu.core_type<tc>} {
    %c0 = arith.constant 0 : index
    %c0_0 = arith.constant 0 : index
    %0 = vector.load %arg0[%c0, %c0_0] : memref<8x128xf32, #tpu.memory_space<vmem>>, vector<8x128xf32>
    %c0_1 = arith.constant 0 : index
    %c0_2 = arith.constant 0 : index
    %1 = vector.load %arg1[%c0_1, %c0_2] : memref<128x128xf32, #tpu.memory_space<vmem>>, vector<128x128xf32>
    %cst = arith.constant dense<0.000000e+00> : vector<8x128xf32>
    %2 = tpu.matmul %0, %1, %cst {dimension_numbers = #tpu.dot_dimension_numbers<[1], [0], [0], [1], [0, 0, 1, 1], [], []>} : vector<8x128xf32>, vector<128x128xf32>, vector<8x128xf32> -> vector<8x128xf32>
    %c0_3 = arith.constant 0 : index
    %c0_4 = arith.constant 0 : index
    %3 = vector.load %arg2[%c0_3, %c0_4] : memref<8x128xf32, #tpu.memory_space<vmem>>, vector<8x128xf32>
    tpu.vector_store %arg2[%c0_3, %c0_4], %2 {strides = array<i32>} : memref<8x128xf32, #tpu.memory_space<vmem>>, vector<8x128xf32>,
    return
  }
}

</mosaic_0001>

<llo_original>
// kernel: tpu_custom_call.1
$region0: #{tpu_custom_call.1}
  #allocation0 [shape = 'u32[]', space=smem, size = 0x4, offset = 0x4, fixed_abs, tag = 'smem constant byte address 0x4 - core index']
  #allocation1 [shape = 'u32[72,128]{1,0:T(1,128)}', space=vmem, size = 0x9000, scoped, tag = 'internal scratch']
  %s0 = inlined_call_operand.hbm [shape: f32[8,128], index: 0, kind: input, shape index: {}]
  %s1 = inlined_call_operand.hbm [shape: f32[128,128], index: 1, kind: input, shape index: {}]
  %s2 = inlined_call_operand.hbm [shape: f32[8,128], index: 2, kind: output, shape index: {}]
  %s3 = sld [smem:[#allocation0]]
  $region26: #{tpu_custom_call.1} parent=0
    _
  %s5 = ssub.s32 1, %s3
  %s6 = scalar_select 0, %s5, %s3
  $region1: #{tpu_custom_call.1} parent=0
    #allocation2 [shape = 'u8[4096]{0}', space=vmem, size = 0x1000, scoped, tag = 'input window, operand 0, single buffered']
    #allocation3 [shape = 's32[1]{0}', space=sflag, size = 0x4, scoped, tag = 'scoped memory for tpu_custom_call.1']
    #allocation4 [shape = 's32[1]{0}', space=sflag, size = 0x4, scoped, tag = 'scoped memory for tpu_custom_call.1']
    #allocation5 [shape = 'u8[65536]{0}', space=vmem, size = 0x10000, scoped, tag = 'input window, operand 1, single buffered']
    #allocation6 [shape = 's32[1]{0}', space=sflag, size = 0x4, scoped, tag = 'scoped memory for tpu_custom_call.1']
    #allocation7 [shape = 'u8[4096]{0}', space=vmem, size = 0x1000, scoped, tag = 'output window, operand 0, single buffered']
    %7 = vsyncpa [#allocation3], 0
    %8 = vsyncpa [#allocation6], 0
    %9 = vsyncpa [#allocation4], 0
    // Predicated region
    $region2: #{tpu_custom_call.1} parent=1 // pred_check
      _
    $region3: #{tpu_custom_call.1} parent=1 // pred_check_branch
      %11 = sbr.rel (0) target = $region5
    $region4: #{tpu_custom_call.1} parent=1 // pred_region
      %13 = vsyncadd [#allocation3], 0
      %s15 = sshll.u32 %s0, 4
      %s16 = int_to_ptr.hbm [resolvable:$true] %s15
      %s17 = sshll.u32 [#allocation2], 4
      %s18 = int_to_ptr.vmem [resolvable:$true] %s17
      %20 = dma.hbm_to_vmem [thread:$0]  %s16, 128, %s18, [#allocation3]
    $region5: #{tpu_custom_call.1} parent=1 // pred_fallthru
      _
    // Predicated region
    $region6: #{tpu_custom_call.1} parent=1 // pred_check
      _
    $region7: #{tpu_custom_call.1} parent=1 // pred_check_branch
      %22 = sbr.rel (0) target = $region9
    $region8: #{tpu_custom_call.1} parent=1 // pred_region
      %24 = vsyncadd [#allocation6], 0
      %s25 = sshll.u32 %s1, 4
      %s26 = int_to_ptr.hbm [resolvable:$true] %s25
      %s27 = sshll.u32 [#allocation5], 4
      %s28 = int_to_ptr.vmem [resolvable:$true] %s27
      %33 = dma.hbm_to_vmem [thread:$0]  %s26, 2048, %s28, [#allocation6], 128, 128, 8
    $region9: #{tpu_custom_call.1} parent=1 // pred_fallthru
      _
    // Predicated region
    $region10: #{tpu_custom_call.1} parent=1 // pred_check
      _
    $region11: #{tpu_custom_call.1} parent=1 // pred_check_branch
      %35 = sbr.rel (0) target = $region13
    $region12: #{tpu_custom_call.1} parent=1 // pred_region
      %37 = dma.done [#allocation3], 128
    $region13: #{tpu_custom_call.1} parent=1 // pred_fallthru
      _
    // Predicated region
    $region14: #{tpu_custom_call.1} parent=1 // pred_check
      _
    $region15: #{tpu_custom_call.1} parent=1 // pred_check_branch
      %39 = sbr.rel (0) target = $region17
    $region16: #{tpu_custom_call.1} parent=1 // pred_region
      %41 = dma.done [#allocation6], 2048
    $region17: #{tpu_custom_call.1} parent=1 // pred_fallthru
      _
    %v42 = vld [vmem:[#allocation2] sm:$0xff]
    %v43 = vld [vmem:[#allocation5] sm:$0xff]
    %v44 = vld [vmem:[#allocation5 + $0x8] sm:$0xff]
    %v45 = vld [vmem:[#allocation5 + $0x10] sm:$0xff]
    %v46 = vld [vmem:[#allocation5 + $0x18] sm:$0xff]
    %v47 = vld [vmem:[#allocation5 + $0x20] sm:$0xff]
    %v48 = vld [vmem:[#allocation5 + $0x28] sm:$0xff]
    %v49 = vld [vmem:[#allocation5 + $0x30] sm:$0xff]
    %v50 = vld [vmem:[#allocation5 + $0x38] sm:$0xff]
    %v51 = vld [vmem:[#allocation5 + $0x40] sm:$0xff]
    %v52 = vld [vmem:[#allocation5 + $0x48] sm:$0xff]
    %v53 = vld [vmem:[#allocation5 + $0x50] sm:$0xff]
    %v54 = vld [vmem:[#allocation5 + $0x58] sm:$0xff]
    %v55 = vld [vmem:[#allocation5 + $0x60] sm:$0xff]
    %v56 = vld [vmem:[#allocation5 + $0x68] sm:$0xff]
    %v57 = vld [vmem:[#allocation5 + $0x70] sm:$0xff]
    %v58 = vld [vmem:[#allocation5 + $0x78] sm:$0xff]
    %59 = vmatpush.msra.mxu0 %v58
    %60 = vmatpush.msra.mxu0 %v57
    %61 = vmatpush.msra.mxu0 %v56
    %62 = vmatpush.msra.mxu0 %v55
    %63 = vmatpush.msra.mxu0 %v54
    %64 = vmatpush.msra.mxu0 %v53
    %65 = vmatpush.msra.mxu0 %v52
    %66 = vmatpush.msra.mxu0 %v51
    %67 = vmatpush.msra.mxu0 %v50
    %68 = vmatpush.msra.mxu0 %v49
    %69 = vmatpush.msra.mxu0 %v48
    %70 = vmatpush.msra.mxu0 %v47
    %71 = vmatpush.msra.mxu0 %v46
    %72 = vmatpush.msra.mxu0 %v45
    %73 = vmatpush.msra.mxu0 %v44
    %74 = vmatpush.msra.mxu0 %v43
    %75 = vmatmul.f32.gmra.mxu0 %v42
    %v76 = vpop.f32.mrf.mxu0
    %v77 = vadd.f32 0.0, %v76
    %78 = vdwg.mxu0
    %79 = vst [vmem:[#allocation7] sm:$0xff] %v77
    // Predicated region
    $region18: #{tpu_custom_call.1} parent=1 // pred_check
      _
    $region19: #{tpu_custom_call.1} parent=1 // pred_check_branch
      %81 = sbr.rel (0) target = $region21
    $region20: #{tpu_custom_call.1} parent=1 // pred_region
      %83 = vsyncadd [#allocation4], 0
      %s85 = sshll.u32 [#allocation7], 4
      %s86 = int_to_ptr.vmem [resolvable:$true] %s85
      %s87 = sshll.u32 %s2, 4
      %s88 = int_to_ptr.hbm [resolvable:$true] %s87
      %90 = dma.vmem_to_hbm [thread:$0]  %s86, 128, %s88, [#allocation4]
    $region21: #{tpu_custom_call.1} parent=1 // pred_fallthru
      _
    // Predicated region
    $region22: #{tpu_custom_call.1} parent=1 // pred_check
      _
    $region23: #{tpu_custom_call.1} parent=1 // pred_check_branch
      %92 = sbr.rel (0) target = $region25
    $region24: #{tpu_custom_call.1} parent=1 // pred_region
      %94 = dma.done [#allocation4], 128
    $region25: #{tpu_custom_call.1} parent=1 // pred_fallthru
      _
    %95 = vsyncpa [#allocation3], 1
    %96 = vsyncpa [#allocation6], 1
    %97 = vsyncpa [#allocation4], 1

</llo_original>
